<compile_context>
chip_gen: v7x
topology: tpu7x:2x2x1
jax: 0.10.0
libtpu: 0.0.40
codegen_flags: <defaults>
</compile_context>

<pallas_src>
import jax
import jax.numpy as jnp
from jax.experimental import pallas as pl
from jax.experimental.pallas import tpu as pltpu


def _upsample_matmul_kernel(x_ref, r_ref, o_ref):
    """One grid step: TB flattened images -> TB flattened upsampled images.

    x_ref: (TB, H*W)      input rows (one (n, c) image per row)
    r_ref: (H*W, Ho*Wo)   constant 0/1 replication matrix, bfloat16
    o_ref: (TB, Ho*Wo)    output rows
    """
    xf = x_ref[...].astype(jnp.float32)           # exact for f32 / bf16 inputs
    # Split xf into three bf16-representable pieces via mantissa masking so that
    # xf == p1 + p2 + p3 exactly (disjoint, same-sign bit-fields).
    mask = jnp.uint32(0xFFFF0000)
    p1 = pltpu.bitcast(pltpu.bitcast(xf, jnp.uint32) & mask, jnp.float32)
    r1 = xf - p1
    p2 = pltpu.bitcast(pltpu.bitcast(r1, jnp.uint32) & mask, jnp.float32)
    p3 = r1 - p2

    rep = r_ref[...]                              # (H*W, Ho*Wo) bf16, entries 0/1
    # Each matmul is an exact gather of its piece (one 1.0 per output column,
    # bf16 x {0,1} products are exact in the f32 accumulator); the staged f32
    # sums recombine to the original value exactly.
    acc = jnp.dot(p1.astype(jnp.bfloat16), rep, preferred_element_type=jnp.float32)
    acc = acc + jnp.dot(p2.astype(jnp.bfloat16), rep, preferred_element_type=jnp.float32)
    acc = acc + jnp.dot(p3.astype(jnp.bfloat16), rep, preferred_element_type=jnp.float32)
    o_ref[...] = acc.astype(o_ref.dtype)


def upsample_nearest(x_nchw: jax.Array, scale_factor: int) -> jax.Array:
    """Equivalent of UpSample(scale_factor, mode='nearest').forward(x) for NCHW x."""
    assert int(scale_factor) == scale_factor and scale_factor >= 1, (
        "only integer scale factors are supported")
    s = int(scale_factor)
    if s == 1:
        return x_nchw

    n, c, h, w = x_nchw.shape
    ho, wo = h * s, w * s
    b = n * c
    hw, howo = h * w, ho * wo
    itemsize = jnp.dtype(x_nchw.dtype).itemsize

    # Constant replication matrix: R[i, j] = 1 iff flattened input pixel i is the
    # nearest-neighbor source of flattened output pixel j.
    # Size (H*W, Ho*Wo) bf16 -- small for YOLO-scale feature maps (13x13, 26x26).
    j = jnp.arange(howo, dtype=jnp.int32)
    src = (j // wo // s) * w + (j % wo) // s
    rmat = (jnp.arange(hw, dtype=jnp.int32)[:, None] == src[None, :]).astype(jnp.bfloat16)

    x2 = x_nchw.reshape(b, hw)   # free row-major reshape (no data movement)

    # Row-block size: target ~1 MiB output blocks; multiple of 8 rows (sublane rule).
    tb = max(1, min(b, (1 << 20) // max(howo * itemsize, 1)))
    if tb < b:
        tb = max(8, (tb // 8) * 8)
    tb = min(tb, b)
    grid = (pl.cdiv(b, tb),)

    out2 = pl.pallas_call(
        _upsample_matmul_kernel,
        out_shape=jax.ShapeDtypeStruct((b, howo), x_nchw.dtype),
        grid=grid,
        in_specs=[
            pl.BlockSpec((tb, hw), lambda i: (i, 0)),
            pl.BlockSpec((hw, howo), lambda i: (0, 0)),   # constant block, stays resident
        ],
        out_specs=pl.BlockSpec((tb, howo), lambda i: (i, 0)),
        compiler_params=pltpu.CompilerParams(
            dimension_semantics=("parallel",),            # lets v7x shard across both TCs
            vmem_limit_bytes=32 * 1024 * 1024,
        ),
        cost_estimate=pl.CostEstimate(
            flops=3 * 2 * b * hw * howo,
            transcendentals=0,
            bytes_accessed=(b * hw + b * howo) * itemsize + hw * howo * 2,
        ),
    )(x2, rmat)

    return out2.reshape(n, c, ho, wo)   # free reshape back to NCHW


if __name__ == "__main__":
    key = jax.random.PRNGKey(0)
    # Small shapes consistent with a conv-style NCHW feature map.
    N, C, H, W = 2, 4, 16, 16
    SCALE = 2

    x = jax.random.normal(key, (N, C, H, W), dtype=jnp.float32)

    y = jax.block_until_ready(upsample_nearest(x, SCALE))

    # Reference: nearest-neighbor upsample == repeat along H and W.
    y_ref = jnp.repeat(jnp.repeat(x, SCALE, axis=2), SCALE, axis=3)

    assert y.shape == (N, C, H * SCALE, W * SCALE), y.shape
    assert y.dtype == x.dtype
    assert jnp.array_equal(y, y_ref), "mismatch vs reference nearest upsample"

    print("KERNEL_OK")
</pallas_src>

<mosaic_0001>
module attributes {stable_mosaic.version = 11 : i64} {
  func.func @_upsample_matmul_kernel(%arg0: i32, %arg1: memref<8x256xf32, #tpu.memory_space<vmem>>, %arg2: memref<256x1024xbf16, #tpu.memory_space<vmem>>, %arg3: memref<8x1024xf32, #tpu.memory_space<vmem>>) attributes {dimension_semantics = [#tpu.dimension_semantics<parallel>], iteration_bounds = array<i64: 1>, scalar_prefetch = 0 : i64, scratch_operands = 0 : i64, tpu.core_type = #tpu.core_type<tc>, window_params = [{transform_indices = @transform_0, window_bounds = array<i64: 8, 256>}, {pipeline_mode = #tpu.pipeline_mode<synchronous>, transform_indices = @transform_1, window_bounds = array<i64: 256, 1024>}, {transform_indices = @transform_2, window_bounds = array<i64: 8, 1024>}]} {
    %c0 = arith.constant 0 : index
    %c0_0 = arith.constant 0 : index
    %0 = vector.load %arg1[%c0, %c0_0] : memref<8x256xf32, #tpu.memory_space<vmem>>, vector<8x256xf32>
    %1 = tpu.bitcast %0 : vector<8x256xf32> -> vector<8x256xi32>
    %c-65536_i32 = arith.constant -65536 : i32
    %2 = vector.broadcast %c-65536_i32 : i32 to vector<8x256xi32>
    %3 = arith.andi %1, %2 : vector<8x256xi32>
    %4 = tpu.bitcast %3 : vector<8x256xi32> -> vector<8x256xf32>
    %5 = arith.subf %0, %4 : vector<8x256xf32>
    %6 = tpu.bitcast %5 : vector<8x256xf32> -> vector<8x256xi32>
    %c-65536_i32_1 = arith.constant -65536 : i32
    %7 = vector.broadcast %c-65536_i32_1 : i32 to vector<8x256xi32>
    %8 = arith.andi %6, %7 : vector<8x256xi32>
    %9 = tpu.bitcast %8 : vector<8x256xi32> -> vector<8x256xf32>
    %10 = arith.subf %5, %9 : vector<8x256xf32>
    %c0_2 = arith.constant 0 : index
    %c0_3 = arith.constant 0 : index
    %11 = vector.load %arg2[%c0_2, %c0_3] : memref<256x1024xbf16, #tpu.memory_space<vmem>>, vector<256x1024xbf16>
    %12 = arith.truncf %4 : vector<8x256xf32> to vector<8x256xbf16>
    %cst = arith.constant dense<0.000000e+00> : vector<8x1024xf32>
    %13 = tpu.matmul %12, %11, %cst {dimension_numbers = #tpu.dot_dimension_numbers<[1], [0], [0], [1], [0, 0, 1, 1], [], []>} : vector<8x256xbf16>, vector<256x1024xbf16>, vector<8x1024xf32> -> vector<8x1024xf32>
    %14 = arith.truncf %9 : vector<8x256xf32> to vector<8x256xbf16>
    %cst_4 = arith.constant dense<0.000000e+00> : vector<8x1024xf32>
    %15 = tpu.matmul %14, %11, %cst_4 {dimension_numbers = #tpu.dot_dimension_numbers<[1], [0], [0], [1], [0, 0, 1, 1], [], []>} : vector<8x256xbf16>, vector<256x1024xbf16>, vector<8x1024xf32> -> vector<8x1024xf32>
    %16 = arith.addf %13, %15 : vector<8x1024xf32>
    %17 = arith.truncf %10 : vector<8x256xf32> to vector<8x256xbf16>
    %cst_5 = arith.constant dense<0.000000e+00> : vector<8x1024xf32>
    %18 = tpu.matmul %17, %11, %cst_5 {dimension_numbers = #tpu.dot_dimension_numbers<[1], [0], [0], [1], [0, 0, 1, 1], [], []>} : vector<8x256xbf16>, vector<256x1024xbf16>, vector<8x1024xf32> -> vector<8x1024xf32>
    %19 = arith.addf %16, %18 : vector<8x1024xf32>
    %c0_6 = arith.constant 0 : index
    %c0_7 = arith.constant 0 : index
    %20 = vector.load %arg3[%c0_6, %c0_7] : memref<8x1024xf32, #tpu.memory_space<vmem>>, vector<8x1024xf32>
    tpu.vector_store %arg3[%c0_6, %c0_7], %19 {strides = array<i32>} : memref<8x1024xf32, #tpu.memory_space<vmem>>, vector<8x1024xf32>,
    return
  }
  func.func @transform_0(%arg0: i32) -> (i32, i32) {
    %c0_i32 = arith.constant 0 : i32
    %c0_i32_0 = arith.constant 0 : i32
    return %arg0, %c0_i32 : i32, i32
  }
  func.func @transform_1(%arg0: i32) -> (i32, i32) {
    %c0_i32 = arith.constant 0 : i32
    %c0_i32_0 = arith.constant 0 : i32
    %c0_i32_1 = arith.constant 0 : i32
    return %c0_i32, %c0_i32_0 : i32, i32
  }
  func.func @transform_2(%arg0: i32) -> (i32, i32) {
    %c0_i32 = arith.constant 0 : i32
    %c0_i32_0 = arith.constant 0 : i32
    return %arg0, %c0_i32 : i32, i32
  }
}

</mosaic_0001>

<llo_original>
// kernel: tpu_custom_call.1
$region0: #{tpu_custom_call.1}
  #allocation0 [shape = 'u32[]', space=smem, size = 0x4, offset = 0x4, fixed_abs, tag = 'smem constant byte address 0x4 - core index']
  #allocation1 [shape = 'u32[144,128]{1,0:T(1,128)}', space=vmem, size = 0x12000, scoped, tag = 'internal scratch']
  %s0 = inlined_call_operand.hbm [shape: f32[8,256], index: 0, kind: input, shape index: {}]
  %s1 = inlined_call_operand.hbm [shape: bf16[256,1024], index: 1, kind: input, shape index: {}]
  %s2 = inlined_call_operand.hbm [shape: f32[8,1024], index: 2, kind: output, shape index: {}]
  %s3 = sld [smem:[#allocation0]]
  $region26: #{tpu_custom_call.1} parent=0
    _
  %s5 = ssub.s32 1, %s3
  %s6 = scalar_select 0, %s5, %s3
  $region1: #{tpu_custom_call.1} parent=0
    #allocation2 [shape = 'u8[8192]{0}', space=vmem, size = 0x2000, scoped, tag = 'input window, operand 0, single buffered']
    #allocation3 [shape = 's32[1]{0}', space=sflag, size = 0x4, scoped, tag = 'scoped memory for tpu_custom_call.1']
    #allocation4 [shape = 's32[1]{0}', space=sflag, size = 0x4, scoped, tag = 'scoped memory for tpu_custom_call.1']
    #allocation5 [shape = 'u8[524288]{0}', space=vmem, size = 0x80000, scoped, tag = 'input window, operand 1, single buffered']
    #allocation6 [shape = 's32[1]{0}', space=sflag, size = 0x4, scoped, tag = 'scoped memory for tpu_custom_call.1']
    #allocation7 [shape = 'u8[32768]{0}', space=vmem, size = 0x8000, scoped, tag = 'output window, operand 0, single buffered']
    %7 = vsyncpa [#allocation3], 0
    %8 = vsyncpa [#allocation6], 0
    %9 = vsyncpa [#allocation4], 0
    // Predicated region
    $region2: #{tpu_custom_call.1} parent=1 // pred_check
      _
    $region3: #{tpu_custom_call.1} parent=1 // pred_check_branch
      %11 = sbr.rel (0) target = $region5
    $region4: #{tpu_custom_call.1} parent=1 // pred_region
      %s13 = ssub.s32 256, 256
      %14 = vsyncadd [#allocation3], %s13
      %s16 = sshll.u32 [#allocation2], 4
      %s17 = int_to_ptr.vmem [resolvable:$true] %s16
      %19 = dma.hbm_to_vmem [thread:$0]  %s0, 256, %s17, [#allocation3]
    $region5: #{tpu_custom_call.1} parent=1 // pred_fallthru
      _
    // Predicated region
    $region6: #{tpu_custom_call.1} parent=1 // pred_check
      _
    $region7: #{tpu_custom_call.1} parent=1 // pred_check_branch
      %21 = sbr.rel (0) target = $region9
    $region8: #{tpu_custom_call.1} parent=1 // pred_region
      %s23 = ssub.s32 16384, 16384
      %24 = vsyncadd [#allocation6], %s23
      %s25 = sshll.u32 [#allocation5], 4
      %s26 = int_to_ptr.vmem [resolvable:$true] %s25
      %31 = dma.hbm_to_vmem [thread:$0]  %s1, 16384, %s26, [#allocation6], 512, 512, 32
    $region9: #{tpu_custom_call.1} parent=1 // pred_fallthru
      _
    // Predicated region
    $region10: #{tpu_custom_call.1} parent=1 // pred_check
      _
    $region11: #{tpu_custom_call.1} parent=1 // pred_check_branch
      %33 = sbr.rel (0) target = $region13
    $region12: #{tpu_custom_call.1} parent=1 // pred_region
      %34 = dma.done [#allocation3], 256
    $region13: #{tpu_custom_call.1} parent=1 // pred_fallthru
      _
    // Predicated region
    $region14: #{tpu_custom_call.1} parent=1 // pred_check
      _
    $region15: #{tpu_custom_call.1} parent=1 // pred_check_branch
      %36 = sbr.rel (0) target = $region17
    $region16: #{tpu_custom_call.1} parent=1 // pred_region
      %37 = dma.done [#allocation6], 16384
    $region17: #{tpu_custom_call.1} parent=1 // pred_fallthru
      _
    %v38 = vld [vmem:[#allocation2] sm:$0xff]
    %v39 = vld [vmem:[#allocation2 + $0x8] sm:$0xff]
    %v42 = vand.u32 %v38, 4294901760
    %v43 = vand.u32 %v39, 4294901760
    %v46 = vsub.f32 %v38, %v42
    %v47 = vsub.f32 %v39, %v43
    %v50 = vand.u32 %v46, 4294901760
    %v51 = vand.u32 %v47, 4294901760
    %v54 = vsub.f32 %v46, %v50
    %v55 = vsub.f32 %v47, %v51
    %v56 = vld [vmem:[#allocation5] sm:$0xff]
    %v57 = vld [vmem:[#allocation5 + $0x8] sm:$0xff]
    %v58 = vld [vmem:[#allocation5 + $0x10] sm:$0xff]
    %v59 = vld [vmem:[#allocation5 + $0x18] sm:$0xff]
    %v60 = vld [vmem:[#allocation5 + $0x20] sm:$0xff]
    %v61 = vld [vmem:[#allocation5 + $0x28] sm:$0xff]
    %v62 = vld [vmem:[#allocation5 + $0x30] sm:$0xff]
    %v63 = vld [vmem:[#allocation5 + $0x38] sm:$0xff]
    %v64 = vld [vmem:[#allocation5 + $0x40] sm:$0xff]
    %v65 = vld [vmem:[#allocation5 + $0x48] sm:$0xff]
    %v66 = vld [vmem:[#allocation5 + $0x50] sm:$0xff]
    %v67 = vld [vmem:[#allocation5 + $0x58] sm:$0xff]
    %v68 = vld [vmem:[#allocation5 + $0x60] sm:$0xff]
    %v69 = vld [vmem:[#allocation5 + $0x68] sm:$0xff]
    %v70 = vld [vmem:[#allocation5 + $0x70] sm:$0xff]
    %v71 = vld [vmem:[#allocation5 + $0x78] sm:$0xff]
    %v72 = vld [vmem:[#allocation5 + $0x80] sm:$0xff]
    %v73 = vld [vmem:[#allocation5 + $0x88] sm:$0xff]
    %v74 = vld [vmem:[#allocation5 + $0x90] sm:$0xff]
    %v75 = vld [vmem:[#allocation5 + $0x98] sm:$0xff]
    %v76 = vld [vmem:[#allocation5 + $0xa0] sm:$0xff]
    %v77 = vld [vmem:[#allocation5 + $0xa8] sm:$0xff]
    %v78 = vld [vmem:[#allocation5 + $0xb0] sm:$0xff]
    %v79 = vld [vmem:[#allocation5 + $0xb8] sm:$0xff]
    %v80 = vld [vmem:[#allocation5 + $0xc0] sm:$0xff]
    %v81 = vld [vmem:[#allocation5 + $0xc8] sm:$0xff]
    %v82 = vld [vmem:[#allocation5 + $0xd0] sm:$0xff]
    %v83 = vld [vmem:[#allocation5 + $0xd8] sm:$0xff]
    %v84 = vld [vmem:[#allocation5 + $0xe0] sm:$0xff]
    %v85 = vld [vmem:[#allocation5 + $0xe8] sm:$0xff]
    %v86 = vld [vmem:[#allocation5 + $0xf0] sm:$0xff]
    %v87 = vld [vmem:[#allocation5 + $0xf8] sm:$0xff]
    %v88 = vld [vmem:[#allocation5 + $0x100] sm:$0xff]
    %v89 = vld [vmem:[#allocation5 + $0x108] sm:$0xff]
    %v90 = vld [vmem:[#allocation5 + $0x110] sm:$0xff]
    %v91 = vld [vmem:[#allocation5 + $0x118] sm:$0xff]
    %v92 = vld [vmem:[#allocation5 + $0x120] sm:$0xff]
    %v93 = vld [vmem:[#allocation5 + $0x128] sm:$0xff]
    %v94 = vld [vmem:[#allocation5 + $0x130] sm:$0xff]
    %v95 = vld [vmem:[#allocation5 + $0x138] sm:$0xff]
    %v96 = vld [vmem:[#allocation5 + $0x140] sm:$0xff]
    %v97 = vld [vmem:[#allocation5 + $0x148] sm:$0xff]
    %v98 = vld [vmem:[#allocation5 + $0x150] sm:$0xff]
    %v99 = vld [vmem:[#allocation5 + $0x158] sm:$0xff]
    %v100 = vld [vmem:[#allocation5 + $0x160] sm:$0xff]
    %v101 = vld [vmem:[#allocation5 + $0x168] sm:$0xff]
    %v102 = vld [vmem:[#allocation5 + $0x170] sm:$0xff]
    %v103 = vld [vmem:[#allocation5 + $0x178] sm:$0xff]
    %v104 = vld [vmem:[#allocation5 + $0x180] sm:$0xff]
    %v105 = vld [vmem:[#allocation5 + $0x188] sm:$0xff]
    %v106 = vld [vmem:[#allocation5 + $0x190] sm:$0xff]
    %v107 = vld [vmem:[#allocation5 + $0x198] sm:$0xff]
    %v108 = vld [vmem:[#allocation5 + $0x1a0] sm:$0xff]
    %v109 = vld [vmem:[#allocation5 + $0x1a8] sm:$0xff]
    %v110 = vld [vmem:[#allocation5 + $0x1b0] sm:$0xff]
    %v111 = vld [vmem:[#allocation5 + $0x1b8] sm:$0xff]
    %v112 = vld [vmem:[#allocation5 + $0x1c0] sm:$0xff]
    %v113 = vld [vmem:[#allocation5 + $0x1c8] sm:$0xff]
    %v114 = vld [vmem:[#allocation5 + $0x1d0] sm:$0xff]
    %v115 = vld [vmem:[#allocation5 + $0x1d8] sm:$0xff]
    %v116 = vld [vmem:[#allocation5 + $0x1e0] sm:$0xff]
    %v117 = vld [vmem:[#allocation5 + $0x1e8] sm:$0xff]
    %v118 = vld [vmem:[#allocation5 + $0x1f0] sm:$0xff]
    %v119 = vld [vmem:[#allocation5 + $0x1f8] sm:$0xff]
    %v120 = vld [vmem:[#allocation5 + $0x200] sm:$0xff]
    %v121 = vld [vmem:[#allocation5 + $0x208] sm:$0xff]
    %v122 = vld [vmem:[#allocation5 + $0x210] sm:$0xff]
    %v123 = vld [vmem:[#allocation5 + $0x218] sm:$0xff]
    %v124 = vld [vmem:[#allocation5 + $0x220] sm:$0xff]
    %v125 = vld [vmem:[#allocation5 + $0x228] sm:$0xff]
    %v126 = vld [vmem:[#allocation5 + $0x230] sm:$0xff]
    %v127 = vld [vmem:[#allocation5 + $0x238] sm:$0xff]
    %v128 = vld [vmem:[#allocation5 + $0x240] sm:$0xff]
    %v129 = vld [vmem:[#allocation5 + $0x248] sm:$0xff]
    %v130 = vld [vmem:[#allocation5 + $0x250] sm:$0xff]
    %v131 = vld [vmem:[#allocation5 + $0x258] sm:$0xff]
    %v132 = vld [vmem:[#allocation5 + $0x260] sm:$0xff]
    %v133 = vld [vmem:[#allocation5 + $0x268] sm:$0xff]
    %v134 = vld [vmem:[#allocation5 + $0x270] sm:$0xff]
    %v135 = vld [vmem:[#allocation5 + $0x278] sm:$0xff]
    %v136 = vld [vmem:[#allocation5 + $0x280] sm:$0xff]
    %v137 = vld [vmem:[#allocation5 + $0x288] sm:$0xff]
    %v138 = vld [vmem:[#allocation5 + $0x290] sm:$0xff]
    %v139 = vld [vmem:[#allocation5 + $0x298] sm:$0xff]
    %v140 = vld [vmem:[#allocation5 + $0x2a0] sm:$0xff]
    %v141 = vld [vmem:[#allocation5 + $0x2a8] sm:$0xff]
    %v142 = vld [vmem:[#allocation5 + $0x2b0] sm:$0xff]
    %v143 = vld [vmem:[#allocation5 + $0x2b8] sm:$0xff]
    %v144 = vld [vmem:[#allocation5 + $0x2c0] sm:$0xff]
    %v145 = vld [vmem:[#allocation5 + $0x2c8] sm:$0xff]
    %v146 = vld [vmem:[#allocation5 + $0x2d0] sm:$0xff]
    %v147 = vld [vmem:[#allocation5 + $0x2d8] sm:$0xff]
    %v148 = vld [vmem:[#allocation5 + $0x2e0] sm:$0xff]
    %v149 = vld [vmem:[#allocation5 + $0x2e8] sm:$0xff]
    %v150 = vld [vmem:[#allocation5 + $0x2f0] sm:$0xff]
    %v151 = vld [vmem:[#allocation5 + $0x2f8] sm:$0xff]
    %v152 = vld [vmem:[#allocation5 + $0x300] sm:$0xff]
    %v153 = vld [vmem:[#allocation5 + $0x308] sm:$0xff]
    %v154 = vld [vmem:[#allocation5 + $0x310] sm:$0xff]
    %v155 = vld [vmem:[#allocation5 + $0x318] sm:$0xff]
    %v156 = vld [vmem:[#allocation5 + $0x320] sm:$0xff]
    %v157 = vld [vmem:[#allocation5 + $0x328] sm:$0xff]
    %v158 = vld [vmem:[#allocation5 + $0x330] sm:$0xff]
    %v159 = vld [vmem:[#allocation5 + $0x338] sm:$0xff]
    %v160 = vld [vmem:[#allocation5 + $0x340] sm:$0xff]
    %v161 = vld [vmem:[#allocation5 + $0x348] sm:$0xff]
    %v162 = vld [vmem:[#allocation5 + $0x350] sm:$0xff]
    %v163 = vld [vmem:[#allocation5 + $0x358] sm:$0xff]
    %v164 = vld [vmem:[#allocation5 + $0x360] sm:$0xff]
    %v165 = vld [vmem:[#allocation5 + $0x368] sm:$0xff]
    %v166 = vld [vmem:[#allocation5 + $0x370] sm:$0xff]
    %v167 = vld [vmem:[#allocation5 + $0x378] sm:$0xff]
    %v168 = vld [vmem:[#allocation5 + $0x380] sm:$0xff]
    %v169 = vld [vmem:[#allocation5 + $0x388] sm:$0xff]
    %v170 = vld [vmem:[#allocation5 + $0x390] sm:$0xff]
    %v171 = vld [vmem:[#allocation5 + $0x398] sm:$0xff]
    %v172 = vld [vmem:[#allocation5 + $0x3a0] sm:$0xff]
    %v173 = vld [vmem:[#allocation5 + $0x3a8] sm:$0xff]
    %v174 = vld [vmem:[#allocation5 + $0x3b0] sm:$0xff]
    %v175 = vld [vmem:[#allocation5 + $0x3b8] sm:$0xff]
    %v176 = vld [vmem:[#allocation5 + $0x3c0] sm:$0xff]
    %v177 = vld [vmem:[#allocation5 + $0x3c8] sm:$0xff]
    %v178 = vld [vmem:[#allocation5 + $0x3d0] sm:$0xff]
    %v179 = vld [vmem:[#allocation5 + $0x3d8] sm:$0xff]
    %v180 = vld [vmem:[#allocation5 + $0x3e0] sm:$0xff]
    %v181 = vld [vmem:[#allocation5 + $0x3e8] sm:$0xff]
    %v182 = vld [vmem:[#allocation5 + $0x3f0] sm:$0xff]
    %v183 = vld [vmem:[#allocation5 + $0x3f8] sm:$0xff]
    %v184 = vpack.c.bf16 %v42, %v42
    %v185 = vpack.c.bf16 %v43, %v43
    %v186 = vpack.c.bf16 %v50, %v50
    %v187 = vpack.c.bf16 %v51, %v51
    %v316 = vunpack.c.l.b16 %v56
    %v317 = vunpack.c.h.b16 %v56
    %v318 = vunpack.c.l.b16 %v57
    %v319 = vunpack.c.h.b16 %v57
    %v320 = vunpack.c.l.b16 %v58
    %v321 = vunpack.c.h.b16 %v58
    %v322 = vunpack.c.l.b16 %v59
    %v323 = vunpack.c.h.b16 %v59
    %v324 = vunpack.c.l.b16 %v60
    %v325 = vunpack.c.h.b16 %v60
    %v326 = vunpack.c.l.b16 %v61
    %v327 = vunpack.c.h.b16 %v61
    %v328 = vunpack.c.l.b16 %v62
    %v329 = vunpack.c.h.b16 %v62
    %v330 = vunpack.c.l.b16 %v63
    %v331 = vunpack.c.h.b16 %v63
    %v332 = vunpack.c.l.b16 %v64
    %v333 = vunpack.c.h.b16 %v64
    %v334 = vunpack.c.l.b16 %v65
    %v335 = vunpack.c.h.b16 %v65
    %v336 = vunpack.c.l.b16 %v66
    %v337 = vunpack.c.h.b16 %v66
    %v338 = vunpack.c.l.b16 %v67
    %v339 = vunpack.c.h.b16 %v67
    %v340 = vunpack.c.l.b16 %v68
    %v341 = vunpack.c.h.b16 %v68
    %v342 = vunpack.c.l.b16 %v69
    %v343 = vunpack.c.h.b16 %v69
    %v344 = vunpack.c.l.b16 %v70
    %v345 = vunpack.c.h.b16 %v70
    %v346 = vunpack.c.l.b16 %v71
    %v347 = vunpack.c.h.b16 %v71
    %v348 = vunpack.c.l.b16 %v72
    %v349 = vunpack.c.h.b16 %v72
    %v350 = vunpack.c.l.b16 %v73
    %v351 = vunpack.c.h.b16 %v73
    %v352 = vunpack.c.l.b16 %v74
    %v353 = vunpack.c.h.b16 %v74
    %v354 = vunpack.c.l.b16 %v75
    %v355 = vunpack.c.h.b16 %v75
    %v356 = vunpack.c.l.b16 %v76
    %v357 = vunpack.c.h.b16 %v76
    %v358 = vunpack.c.l.b16 %v77
    %v359 = vunpack.c.h.b16 %v77
    %v360 = vunpack.c.l.b16 %v78
    %v361 = vunpack.c.h.b16 %v78
    %v362 = vunpack.c.l.b16 %v79
    %v363 = vunpack.c.h.b16 %v79
    %v364 = vunpack.c.l.b16 %v80
    %v365 = vunpack.c.h.b16 %v80
    %v366 = vunpack.c.l.b16 %v81
    %v367 = vunpack.c.h.b16 %v81
    %v368 = vunpack.c.l.b16 %v82
    %v369 = vunpack.c.h.b16 %v82
    %v370 = vunpack.c.l.b16 %v83
    %v371 = vunpack.c.h.b16 %v83
    %v372 = vunpack.c.l.b16 %v84
    %v373 = vunpack.c.h.b16 %v84
    %v374 = vunpack.c.l.b16 %v85
    %v375 = vunpack.c.h.b16 %v85
    %v376 = vunpack.c.l.b16 %v86
    %v377 = vunpack.c.h.b16 %v86
    %v378 = vunpack.c.l.b16 %v87
    %v379 = vunpack.c.h.b16 %v87
    %v380 = vunpack.c.l.b16 %v88
    %v381 = vunpack.c.h.b16 %v88
    %v382 = vunpack.c.l.b16 %v89
    %v383 = vunpack.c.h.b16 %v89
    %v384 = vunpack.c.l.b16 %v90
    %v385 = vunpack.c.h.b16 %v90
    %v386 = vunpack.c.l.b16 %v91
    %v387 = vunpack.c.h.b16 %v91
    %v388 = vunpack.c.l.b16 %v92
    %v389 = vunpack.c.h.b16 %v92
    %v390 = vunpack.c.l.b16 %v93
    %v391 = vunpack.c.h.b16 %v93
    %v392 = vunpack.c.l.b16 %v94
    %v393 = vunpack.c.h.b16 %v94
    %v394 = vunpack.c.l.b16 %v95
    %v395 = vunpack.c.h.b16 %v95
    %v396 = vunpack.c.l.b16 %v96
    %v397 = vunpack.c.h.b16 %v96
    %v398 = vunpack.c.l.b16 %v97
    %v399 = vunpack.c.h.b16 %v97
    %v400 = vunpack.c.l.b16 %v98
    %v401 = vunpack.c.h.b16 %v98
    %v402 = vunpack.c.l.b16 %v99
    %v403 = vunpack.c.h.b16 %v99
    %v404 = vunpack.c.l.b16 %v100
    %v405 = vunpack.c.h.b16 %v100
    %v406 = vunpack.c.l.b16 %v101
    %v407 = vunpack.c.h.b16 %v101
    %v408 = vunpack.c.l.b16 %v102
    %v409 = vunpack.c.h.b16 %v102
    %v410 = vunpack.c.l.b16 %v103
    %v411 = vunpack.c.h.b16 %v103
    %v412 = vunpack.c.l.b16 %v104
    %v413 = vunpack.c.h.b16 %v104
    %v414 = vunpack.c.l.b16 %v105
    %v415 = vunpack.c.h.b16 %v105
    %v416 = vunpack.c.l.b16 %v106
    %v417 = vunpack.c.h.b16 %v106
    %v418 = vunpack.c.l.b16 %v107
    %v419 = vunpack.c.h.b16 %v107
    %v420 = vunpack.c.l.b16 %v108
    %v421 = vunpack.c.h.b16 %v108
    %v422 = vunpack.c.l.b16 %v109
    %v423 = vunpack.c.h.b16 %v109
    %v424 = vunpack.c.l.b16 %v110
    %v425 = vunpack.c.h.b16 %v110
    %v426 = vunpack.c.l.b16 %v111
    %v427 = vunpack.c.h.b16 %v111
    %v428 = vunpack.c.l.b16 %v112
    %v429 = vunpack.c.h.b16 %v112
    %v430 = vunpack.c.l.b16 %v113
    %v431 = vunpack.c.h.b16 %v113
    %v432 = vunpack.c.l.b16 %v114
    %v433 = vunpack.c.h.b16 %v114
    %v434 = vunpack.c.l.b16 %v115
    %v435 = vunpack.c.h.b16 %v115
    %v436 = vunpack.c.l.b16 %v116
    %v437 = vunpack.c.h.b16 %v116
    %v438 = vunpack.c.l.b16 %v117
    %v439 = vunpack.c.h.b16 %v117
    %v440 = vunpack.c.l.b16 %v118
    %v441 = vunpack.c.h.b16 %v118
    %v442 = vunpack.c.l.b16 %v119
    %v443 = vunpack.c.h.b16 %v119
    %v444 = vunpack.c.l.b16 %v120
    %v445 = vunpack.c.h.b16 %v120
    %v446 = vunpack.c.l.b16 %v121
    %v447 = vunpack.c.h.b16 %v121
    %v448 = vunpack.c.l.b16 %v122
    %v449 = vunpack.c.h.b16 %v122
    %v450 = vunpack.c.l.b16 %v123
    %v451 = vunpack.c.h.b16 %v123
    %v452 = vunpack.c.l.b16 %v124
    %v453 = vunpack.c.h.b16 %v124
    %v454 = vunpack.c.l.b16 %v125
    %v455 = vunpack.c.h.b16 %v125
    %v456 = vunpack.c.l.b16 %v126
    %v457 = vunpack.c.h.b16 %v126
    %v458 = vunpack.c.l.b16 %v127
    %v459 = vunpack.c.h.b16 %v127
    %v460 = vunpack.c.l.b16 %v128
    %v461 = vunpack.c.h.b16 %v128
    %v462 = vunpack.c.l.b16 %v129
    %v463 = vunpack.c.h.b16 %v129
    %v464 = vunpack.c.l.b16 %v130
    %v465 = vunpack.c.h.b16 %v130
    %v466 = vunpack.c.l.b16 %v131
    %v467 = vunpack.c.h.b16 %v131
    %v468 = vunpack.c.l.b16 %v132
    %v469 = vunpack.c.h.b16 %v132
    %v470 = vunpack.c.l.b16 %v133
    %v471 = vunpack.c.h.b16 %v133
    %v472 = vunpack.c.l.b16 %v134
    %v473 = vunpack.c.h.b16 %v134
    %v474 = vunpack.c.l.b16 %v135
    %v475 = vunpack.c.h.b16 %v135
    %v476 = vunpack.c.l.b16 %v136
    %v477 = vunpack.c.h.b16 %v136
    %v478 = vunpack.c.l.b16 %v137
    %v479 = vunpack.c.h.b16 %v137
    %v480 = vunpack.c.l.b16 %v138
    %v481 = vunpack.c.h.b16 %v138
    %v482 = vunpack.c.l.b16 %v139
    %v483 = vunpack.c.h.b16 %v139
    %v484 = vunpack.c.l.b16 %v140
    %v485 = vunpack.c.h.b16 %v140
    %v486 = vunpack.c.l.b16 %v141
    %v487 = vunpack.c.h.b16 %v141
    %v488 = vunpack.c.l.b16 %v142
    %v489 = vunpack.c.h.b16 %v142
    %v490 = vunpack.c.l.b16 %v143
    %v491 = vunpack.c.h.b16 %v143
    %v492 = vunpack.c.l.b16 %v144
    %v493 = vunpack.c.h.b16 %v144
    %v494 = vunpack.c.l.b16 %v145
    %v495 = vunpack.c.h.b16 %v145
    %v496 = vunpack.c.l.b16 %v146
    %v497 = vunpack.c.h.b16 %v146
    %v498 = vunpack.c.l.b16 %v147
    %v499 = vunpack.c.h.b16 %v147
    %v500 = vunpack.c.l.b16 %v148
    %v501 = vunpack.c.h.b16 %v148
    %v502 = vunpack.c.l.b16 %v149
    %v503 = vunpack.c.h.b16 %v149
    %v504 = vunpack.c.l.b16 %v150
    %v505 = vunpack.c.h.b16 %v150
    %v506 = vunpack.c.l.b16 %v151
    %v507 = vunpack.c.h.b16 %v151
    %v508 = vunpack.c.l.b16 %v152
    %v509 = vunpack.c.h.b16 %v152
    %v510 = vunpack.c.l.b16 %v153
    %v511 = vunpack.c.h.b16 %v153
    %v512 = vunpack.c.l.b16 %v154
    %v513 = vunpack.c.h.b16 %v154
    %v514 = vunpack.c.l.b16 %v155
    %v515 = vunpack.c.h.b16 %v155
    %v516 = vunpack.c.l.b16 %v156
    %v517 = vunpack.c.h.b16 %v156
    %v518 = vunpack.c.l.b16 %v157
    %v519 = vunpack.c.h.b16 %v157
    %v520 = vunpack.c.l.b16 %v158
    %v521 = vunpack.c.h.b16 %v158
    %v522 = vunpack.c.l.b16 %v159
    %v523 = vunpack.c.h.b16 %v159
    %v524 = vunpack.c.l.b16 %v160
    %v525 = vunpack.c.h.b16 %v160
    %v526 = vunpack.c.l.b16 %v161
    %v527 = vunpack.c.h.b16 %v161
    %v528 = vunpack.c.l.b16 %v162
    %v529 = vunpack.c.h.b16 %v162
    %v530 = vunpack.c.l.b16 %v163
    %v531 = vunpack.c.h.b16 %v163
    %v532 = vunpack.c.l.b16 %v164
    %v533 = vunpack.c.h.b16 %v164
    %v534 = vunpack.c.l.b16 %v165
    %v535 = vunpack.c.h.b16 %v165
    %v536 = vunpack.c.l.b16 %v166
    %v537 = vunpack.c.h.b16 %v166
    %v538 = vunpack.c.l.b16 %v167
    %v539 = vunpack.c.h.b16 %v167
    %v540 = vunpack.c.l.b16 %v168
    %v541 = vunpack.c.h.b16 %v168
    %v542 = vunpack.c.l.b16 %v169
    %v543 = vunpack.c.h.b16 %v169
    %v544 = vunpack.c.l.b16 %v170
    %v545 = vunpack.c.h.b16 %v170
    %v546 = vunpack.c.l.b16 %v171
    %v547 = vunpack.c.h.b16 %v171
    %v548 = vunpack.c.l.b16 %v172
    %v549 = vunpack.c.h.b16 %v172
    %v550 = vunpack.c.l.b16 %v173
    %v551 = vunpack.c.h.b16 %v173
    %v552 = vunpack.c.l.b16 %v174
    %v553 = vunpack.c.h.b16 %v174
    %v554 = vunpack.c.l.b16 %v175
    %v555 = vunpack.c.h.b16 %v175
    %v556 = vunpack.c.l.b16 %v176
    %v557 = vunpack.c.h.b16 %v176
    %v558 = vunpack.c.l.b16 %v177
    %v559 = vunpack.c.h.b16 %v177
    %v560 = vunpack.c.l.b16 %v178
    %v561 = vunpack.c.h.b16 %v178
    %v562 = vunpack.c.l.b16 %v179
    %v563 = vunpack.c.h.b16 %v179
    %v564 = vunpack.c.l.b16 %v180
    %v565 = vunpack.c.h.b16 %v180
    %v566 = vunpack.c.l.b16 %v181
    %v567 = vunpack.c.h.b16 %v181
    %v568 = vunpack.c.l.b16 %v182
    %v569 = vunpack.c.h.b16 %v182
    %v570 = vunpack.c.l.b16 %v183
    %v571 = vunpack.c.h.b16 %v183
    %v572 = vpack.c.b16 %v324, %v316
    %v573 = vpack.c.b16 %v325, %v317
    %v574 = vpack.c.b16 %v326, %v318
    %v575 = vpack.c.b16 %v327, %v319
    %v576 = vpack.c.b16 %v328, %v320
    %v577 = vpack.c.b16 %v329, %v321
    %v578 = vpack.c.b16 %v330, %v322
    %v579 = vpack.c.b16 %v331, %v323
    %v580 = vpack.c.b16 %v340, %v332
    %v581 = vpack.c.b16 %v341, %v333
    %v582 = vpack.c.b16 %v342, %v334
    %v583 = vpack.c.b16 %v343, %v335
    %v584 = vpack.c.b16 %v344, %v336
    %v585 = vpack.c.b16 %v345, %v337
    %v586 = vpack.c.b16 %v346, %v338
    %v587 = vpack.c.b16 %v347, %v339
    %v588 = vpack.c.b16 %v356, %v348
    %v589 = vpack.c.b16 %v357, %v349
    %v590 = vpack.c.b16 %v358, %v350
    %v591 = vpack.c.b16 %v359, %v351
    %v592 = vpack.c.b16 %v360, %v352
    %v593 = vpack.c.b16 %v361, %v353
    %v594 = vpack.c.b16 %v362, %v354
    %v595 = vpack.c.b16 %v363, %v355
    %v596 = vpack.c.b16 %v372, %v364
    %v597 = vpack.c.b16 %v373, %v365
    %v598 = vpack.c.b16 %v374, %v366
    %v599 = vpack.c.b16 %v375, %v367
    %v600 = vpack.c.b16 %v376, %v368
    %v601 = vpack.c.b16 %v377, %v369
    %v602 = vpack.c.b16 %v378, %v370
    %v603 = vpack.c.b16 %v379, %v371
    %v604 = vpack.c.b16 %v388, %v380
    %v605 = vpack.c.b16 %v389, %v381
    %v606 = vpack.c.b16 %v390, %v382
    %v607 = vpack.c.b16 %v391, %v383
    %v608 = vpack.c.b16 %v392, %v384
    %v609 = vpack.c.b16 %v393, %v385
    %v610 = vpack.c.b16 %v394, %v386
    %v611 = vpack.c.b16 %v395, %v387
    %v612 = vpack.c.b16 %v404, %v396
    %v613 = vpack.c.b16 %v405, %v397
    %v614 = vpack.c.b16 %v406, %v398
    %v615 = vpack.c.b16 %v407, %v399
    %v616 = vpack.c.b16 %v408, %v400
    %v617 = vpack.c.b16 %v409, %v401
    %v618 = vpack.c.b16 %v410, %v402
    %v619 = vpack.c.b16 %v411, %v403
    %v620 = vpack.c.b16 %v420, %v412
    %v621 = vpack.c.b16 %v421, %v413
    %v622 = vpack.c.b16 %v422, %v414
    %v623 = vpack.c.b16 %v423, %v415
    %v624 = vpack.c.b16 %v424, %v416
    %v625 = vpack.c.b16 %v425, %v417
    %v626 = vpack.c.b16 %v426, %v418
    %v627 = vpack.c.b16 %v427, %v419
    %v628 = vpack.c.b16 %v436, %v428
    %v629 = vpack.c.b16 %v437, %v429
    %v630 = vpack.c.b16 %v438, %v430
    %v631 = vpack.c.b16 %v439, %v431
    %v632 = vpack.c.b16 %v440, %v432
    %v633 = vpack.c.b16 %v441, %v433
    %v634 = vpack.c.b16 %v442, %v434
    %v635 = vpack.c.b16 %v443, %v435
    %v636 = vpack.c.b16 %v452, %v444
    %v637 = vpack.c.b16 %v453, %v445
    %v638 = vpack.c.b16 %v454, %v446
    %v639 = vpack.c.b16 %v455, %v447
    %v640 = vpack.c.b16 %v456, %v448
    %v641 = vpack.c.b16 %v457, %v449
    %v642 = vpack.c.b16 %v458, %v450
    %v643 = vpack.c.b16 %v459, %v451
    %v644 = vpack.c.b16 %v468, %v460
    %v645 = vpack.c.b16 %v469, %v461
    %v646 = vpack.c.b16 %v470, %v462
    %v647 = vpack.c.b16 %v471, %v463
    %v648 = vpack.c.b16 %v472, %v464
    %v649 = vpack.c.b16 %v473, %v465
    %v650 = vpack.c.b16 %v474, %v466
    %v651 = vpack.c.b16 %v475, %v467
    %v652 = vpack.c.b16 %v484, %v476
    %v653 = vpack.c.b16 %v485, %v477
    %v654 = vpack.c.b16 %v486, %v478
    %v655 = vpack.c.b16 %v487, %v479
    %v656 = vpack.c.b16 %v488, %v480
    %v657 = vpack.c.b16 %v489, %v481
    %v658 = vpack.c.b16 %v490, %v482
    %v659 = vpack.c.b16 %v491, %v483
    %v660 = vpack.c.b16 %v500, %v492
    %v661 = vpack.c.b16 %v501, %v493
    %v662 = vpack.c.b16 %v502, %v494
    %v663 = vpack.c.b16 %v503, %v495
    %v664 = vpack.c.b16 %v504, %v496
    %v665 = vpack.c.b16 %v505, %v497
    %v666 = vpack.c.b16 %v506, %v498
    %v667 = vpack.c.b16 %v507, %v499
    %v668 = vpack.c.b16 %v516, %v508
    %v669 = vpack.c.b16 %v517, %v509
    %v670 = vpack.c.b16 %v518, %v510
    %v671 = vpack.c.b16 %v519, %v511
    %v672 = vpack.c.b16 %v520, %v512
    %v673 = vpack.c.b16 %v521, %v513
    %v674 = vpack.c.b16 %v522, %v514
    %v675 = vpack.c.b16 %v523, %v515
    %v676 = vpack.c.b16 %v532, %v524
    %v677 = vpack.c.b16 %v533, %v525
    %v678 = vpack.c.b16 %v534, %v526
    %v679 = vpack.c.b16 %v535, %v527
    %v680 = vpack.c.b16 %v536, %v528
    %v681 = vpack.c.b16 %v537, %v529
    %v682 = vpack.c.b16 %v538, %v530
    %v683 = vpack.c.b16 %v539, %v531
    %v684 = vpack.c.b16 %v548, %v540
    %v685 = vpack.c.b16 %v549, %v541
    %v686 = vpack.c.b16 %v550, %v542
    %v687 = vpack.c.b16 %v551, %v543
    %v688 = vpack.c.b16 %v552, %v544
    %v689 = vpack.c.b16 %v553, %v545
    %v690 = vpack.c.b16 %v554, %v546
    %v691 = vpack.c.b16 %v555, %v547
    %v692 = vpack.c.b16 %v564, %v556
    %v693 = vpack.c.b16 %v565, %v557
    %v694 = vpack.c.b16 %v566, %v558
    %v695 = vpack.c.b16 %v567, %v559
    %v696 = vpack.c.b16 %v568, %v560
    %v697 = vpack.c.b16 %v569, %v561
    %v698 = vpack.c.b16 %v570, %v562
    %v699 = vpack.c.b16 %v571, %v563
    %828 = vmatprep.subr.bf16.mxu0 %v573
    %829 = vmatpush1.bf16.msra.mxu0 %v572
    %830 = vmatprep.subr.bf16.mxu0 %v581
    %831 = vmatpush1.bf16.msra.mxu0 %v580
    %832 = vmatprep.subr.bf16.mxu0 %v589
    %833 = vmatpush1.bf16.msra.mxu0 %v588
    %834 = vmatprep.subr.bf16.mxu0 %v597
    %835 = vmatpush1.bf16.msra.mxu0 %v596
    %836 = vmatprep.subr.bf16.mxu0 %v605
    %837 = vmatpush1.bf16.msra.mxu0 %v604
    %838 = vmatprep.subr.bf16.mxu0 %v613
    %839 = vmatpush1.bf16.msra.mxu0 %v612
    %840 = vmatprep.subr.bf16.mxu0 %v621
    %841 = vmatpush1.bf16.msra.mxu0 %v620
    %842 = vmatprep.subr.bf16.mxu0 %v629
    %843 = vmatpush1.bf16.msra.mxu0 %v628
    %844 = vmatprep.subr.bf16.mxu0 %v637
    %845 = vmatpush1.bf16.msra.mxu0 %v636
    %846 = vmatprep.subr.bf16.mxu0 %v645
    %847 = vmatpush1.bf16.msra.mxu0 %v644
    %848 = vmatprep.subr.bf16.mxu0 %v653
    %849 = vmatpush1.bf16.msra.mxu0 %v652
    %850 = vmatprep.subr.bf16.mxu0 %v661
    %851 = vmatpush1.bf16.msra.mxu0 %v660
    %852 = vmatprep.subr.bf16.mxu0 %v669
    %853 = vmatpush1.bf16.msra.mxu0 %v668
    %854 = vmatprep.subr.bf16.mxu0 %v677
    %855 = vmatpush1.bf16.msra.mxu0 %v676
    %856 = vmatprep.subr.bf16.mxu0 %v685
    %857 = vmatpush1.bf16.msra.mxu0 %v684
    %858 = vmatprep.subr.bf16.mxu0 %v693
    %859 = vmatpush1.bf16.msra.mxu0 %v692
    %860 = vmatprep.mubr.bf16.mxu0 %v187
    %861 = vmatmul.mubr.bf16.gmra.mrb[0].mxu0 %v186
    %v862 = vpop.f32.mrb[0].mxu0
    %v863 = vadd.f32 0.0, %v862
    %v864 = vpop.f32.mrb[0].mxu0
    %v865 = vadd.f32 0.0, %v864
    %v866 = vpop.f32.mrb[0].mxu0
    %v867 = vpop.f32.mrb[0].mxu0
    %868 = vdwg.mxu0
    %869 = vmatprep.subr.bf16.mxu0 %v575
    %870 = vmatpush1.bf16.msra.mxu0 %v574
    %871 = vmatprep.subr.bf16.mxu0 %v583
    %872 = vmatpush1.bf16.msra.mxu0 %v582
    %873 = vmatprep.subr.bf16.mxu0 %v591
    %874 = vmatpush1.bf16.msra.mxu0 %v590
    %875 = vmatprep.subr.bf16.mxu0 %v599
    %876 = vmatpush1.bf16.msra.mxu0 %v598
    %877 = vmatprep.subr.bf16.mxu0 %v607
    %878 = vmatpush1.bf16.msra.mxu0 %v606
    %879 = vmatprep.subr.bf16.mxu0 %v615
    %880 = vmatpush1.bf16.msra.mxu0 %v614
    %881 = vmatprep.subr.bf16.mxu0 %v623
    %882 = vmatpush1.bf16.msra.mxu0 %v622
    %883 = vmatprep.subr.bf16.mxu0 %v631
    %884 = vmatpush1.bf16.msra.mxu0 %v630
    %885 = vmatprep.subr.bf16.mxu0 %v639
    %886 = vmatpush1.bf16.msra.mxu0 %v638
    %887 = vmatprep.subr.bf16.mxu0 %v647
    %888 = vmatpush1.bf16.msra.mxu0 %v646
    %889 = vmatprep.subr.bf16.mxu0 %v655
    %890 = vmatpush1.bf16.msra.mxu0 %v654
    %891 = vmatprep.subr.bf16.mxu0 %v663
    %892 = vmatpush1.bf16.msra.mxu0 %v662
    %893 = vmatprep.subr.bf16.mxu0 %v671
    %894 = vmatpush1.bf16.msra.mxu0 %v670
    %895 = vmatprep.subr.bf16.mxu0 %v679
    %896 = vmatpush1.bf16.msra.mxu0 %v678
    %897 = vmatprep.subr.bf16.mxu0 %v687
    %898 = vmatpush1.bf16.msra.mxu0 %v686
    %899 = vmatprep.subr.bf16.mxu0 %v695
    %900 = vmatpush1.bf16.msra.mxu0 %v694
    %901 = vmatprep.mubr.bf16.mxu0 %v187
    %902 = vmatmul.mubr.bf16.gmra.mrb[0].mxu0 %v186
    %v903 = vpop.f32.mrb[0].mxu0
    %v904 = vadd.f32 0.0, %v903
    %v905 = vpop.f32.mrb[0].mxu0
    %v906 = vadd.f32 0.0, %v905
    %v907 = vpop.f32.mrb[0].mxu0
    %v908 = vpop.f32.mrb[0].mxu0
    %909 = vdwg.mxu0
    %910 = vmatprep.subr.bf16.mxu0 %v577
    %911 = vmatpush1.bf16.msra.mxu0 %v576
    %912 = vmatprep.subr.bf16.mxu0 %v585
    %913 = vmatpush1.bf16.msra.mxu0 %v584
    %914 = vmatprep.subr.bf16.mxu0 %v593
    %915 = vmatpush1.bf16.msra.mxu0 %v592
    %916 = vmatprep.subr.bf16.mxu0 %v601
    %917 = vmatpush1.bf16.msra.mxu0 %v600
    %918 = vmatprep.subr.bf16.mxu0 %v609
    %919 = vmatpush1.bf16.msra.mxu0 %v608
    %920 = vmatprep.subr.bf16.mxu0 %v617
    %921 = vmatpush1.bf16.msra.mxu0 %v616
    %922 = vmatprep.subr.bf16.mxu0 %v625
    %923 = vmatpush1.bf16.msra.mxu0 %v624
    %924 = vmatprep.subr.bf16.mxu0 %v633
    %925 = vmatpush1.bf16.msra.mxu0 %v632
    %926 = vmatprep.subr.bf16.mxu0 %v641
    %927 = vmatpush1.bf16.msra.mxu0 %v640
    %928 = vmatprep.subr.bf16.mxu0 %v649
    %929 = vmatpush1.bf16.msra.mxu0 %v648
    %930 = vmatprep.subr.bf16.mxu0 %v657
    %931 = vmatpush1.bf16.msra.mxu0 %v656
    %932 = vmatprep.subr.bf16.mxu0 %v665
    %933 = vmatpush1.bf16.msra.mxu0 %v664
    %934 = vmatprep.subr.bf16.mxu0 %v673
    %935 = vmatpush1.bf16.msra.mxu0 %v672
    %936 = vmatprep.subr.bf16.mxu0 %v681
    %937 = vmatpush1.bf16.msra.mxu0 %v680
    %938 = vmatprep.subr.bf16.mxu0 %v689
    %939 = vmatpush1.bf16.msra.mxu0 %v688
    %940 = vmatprep.subr.bf16.mxu0 %v697
    %941 = vmatpush1.bf16.msra.mxu0 %v696
    %942 = vmatprep.mubr.bf16.mxu0 %v187
    %943 = vmatmul.mubr.bf16.gmra.mrb[0].mxu0 %v186
    %v944 = vpop.f32.mrb[0].mxu0
    %v945 = vadd.f32 0.0, %v944
    %v946 = vpop.f32.mrb[0].mxu0
    %v947 = vadd.f32 0.0, %v946
    %v948 = vpop.f32.mrb[0].mxu0
    %v949 = vpop.f32.mrb[0].mxu0
    %950 = vdwg.mxu0
    %951 = vmatprep.subr.bf16.mxu0 %v579
    %952 = vmatpush1.bf16.msra.mxu0 %v578
    %953 = vmatprep.subr.bf16.mxu0 %v587
    %954 = vmatpush1.bf16.msra.mxu0 %v586
    %955 = vmatprep.subr.bf16.mxu0 %v595
    %956 = vmatpush1.bf16.msra.mxu0 %v594
    %957 = vmatprep.subr.bf16.mxu0 %v603
    %958 = vmatpush1.bf16.msra.mxu0 %v602
    %959 = vmatprep.subr.bf16.mxu0 %v611
    %960 = vmatpush1.bf16.msra.mxu0 %v610
    %961 = vmatprep.subr.bf16.mxu0 %v619
    %962 = vmatpush1.bf16.msra.mxu0 %v618
    %963 = vmatprep.subr.bf16.mxu0 %v627
    %964 = vmatpush1.bf16.msra.mxu0 %v626
    %965 = vmatprep.subr.bf16.mxu0 %v635
    %966 = vmatpush1.bf16.msra.mxu0 %v634
    %967 = vmatprep.subr.bf16.mxu0 %v643
    %968 = vmatpush1.bf16.msra.mxu0 %v642
    %969 = vmatprep.subr.bf16.mxu0 %v651
    %970 = vmatpush1.bf16.msra.mxu0 %v650
    %971 = vmatprep.subr.bf16.mxu0 %v659
    %972 = vmatpush1.bf16.msra.mxu0 %v658
    %973 = vmatprep.subr.bf16.mxu0 %v667
    %974 = vmatpush1.bf16.msra.mxu0 %v666
    %975 = vmatprep.subr.bf16.mxu0 %v675
    %976 = vmatpush1.bf16.msra.mxu0 %v674
    %977 = vmatprep.subr.bf16.mxu0 %v683
    %978 = vmatpush1.bf16.msra.mxu0 %v682
    %979 = vmatprep.subr.bf16.mxu0 %v691
    %980 = vmatpush1.bf16.msra.mxu0 %v690
    %981 = vmatprep.subr.bf16.mxu0 %v699
    %982 = vmatpush1.bf16.msra.mxu0 %v698
    %983 = vmatprep.mubr.bf16.mxu0 %v187
    %984 = vmatmul.mubr.bf16.gmra.mrb[0].mxu0 %v186
    %v985 = vpop.f32.mrb[0].mxu0
    %v986 = vadd.f32 0.0, %v985
    %v987 = vpop.f32.mrb[0].mxu0
    %v988 = vadd.f32 0.0, %v987
    %v989 = vpop.f32.mrb[0].mxu0
    %v990 = vpop.f32.mrb[0].mxu0
    %991 = vdwg.mxu0
    %992 = vmatprep.subr.bf16.mxu0 %v573
    %993 = vmatpush1.bf16.msra.mxu0 %v572
    %994 = vmatprep.subr.bf16.mxu0 %v581
    %995 = vmatpush1.bf16.msra.mxu0 %v580
    %996 = vmatprep.subr.bf16.mxu0 %v589
    %997 = vmatpush1.bf16.msra.mxu0 %v588
    %998 = vmatprep.subr.bf16.mxu0 %v597
    %999 = vmatpush1.bf16.msra.mxu0 %v596
    %1000 = vmatprep.subr.bf16.mxu0 %v605
    %1001 = vmatpush1.bf16.msra.mxu0 %v604
    %1002 = vmatprep.subr.bf16.mxu0 %v613
    %1003 = vmatpush1.bf16.msra.mxu0 %v612
    %1004 = vmatprep.subr.bf16.mxu0 %v621
    %1005 = vmatpush1.bf16.msra.mxu0 %v620
    %1006 = vmatprep.subr.bf16.mxu0 %v629
    %1007 = vmatpush1.bf16.msra.mxu0 %v628
    %1008 = vmatprep.subr.bf16.mxu0 %v637
    %1009 = vmatpush1.bf16.msra.mxu0 %v636
    %1010 = vmatprep.subr.bf16.mxu0 %v645
    %1011 = vmatpush1.bf16.msra.mxu0 %v644
    %1012 = vmatprep.subr.bf16.mxu0 %v653
    %1013 = vmatpush1.bf16.msra.mxu0 %v652
    %1014 = vmatprep.subr.bf16.mxu0 %v661
    %1015 = vmatpush1.bf16.msra.mxu0 %v660
    %1016 = vmatprep.subr.bf16.mxu0 %v669
    %1017 = vmatpush1.bf16.msra.mxu0 %v668
    %1018 = vmatprep.subr.bf16.mxu0 %v677
    %1019 = vmatpush1.bf16.msra.mxu0 %v676
    %1020 = vmatprep.subr.bf16.mxu0 %v685
    %1021 = vmatpush1.bf16.msra.mxu0 %v684
    %1022 = vmatprep.subr.bf16.mxu0 %v693
    %1023 = vmatpush1.bf16.msra.mxu0 %v692
    %1024 = vmatprep.mubr.bf16.mxu0 %v185
    %1025 = vmatmul.mubr.bf16.gmra.mrb[0].mxu0 %v184
    %v1026 = vpop.f32.mrb[0].mxu0
    %v1027 = vadd.f32 %v863, %v1026
    %v1028 = vpop.f32.mrb[0].mxu0
    %v1029 = vadd.f32 %v865, %v1028
    %v1030 = vpop.f32.mrb[0].mxu0
    %v1031 = vpop.f32.mrb[0].mxu0
    %1032 = vdwg.mxu0
    %1033 = vmatprep.subr.bf16.mxu0 %v575
    %1034 = vmatpush1.bf16.msra.mxu0 %v574
    %1035 = vmatprep.subr.bf16.mxu0 %v583
    %1036 = vmatpush1.bf16.msra.mxu0 %v582
    %1037 = vmatprep.subr.bf16.mxu0 %v591
    %1038 = vmatpush1.bf16.msra.mxu0 %v590
    %1039 = vmatprep.subr.bf16.mxu0 %v599
    %1040 = vmatpush1.bf16.msra.mxu0 %v598
    %1041 = vmatprep.subr.bf16.mxu0 %v607
    %1042 = vmatpush1.bf16.msra.mxu0 %v606
    %1043 = vmatprep.subr.bf16.mxu0 %v615
    %1044 = vmatpush1.bf16.msra.mxu0 %v614
    %1045 = vmatprep.subr.bf16.mxu0 %v623
    %1046 = vmatpush1.bf16.msra.mxu0 %v622
    %1047 = vmatprep.subr.bf16.mxu0 %v631
    %1048 = vmatpush1.bf16.msra.mxu0 %v630
    %1049 = vmatprep.subr.bf16.mxu0 %v639
    %1050 = vmatpush1.bf16.msra.mxu0 %v638
    %1051 = vmatprep.subr.bf16.mxu0 %v647
    %1052 = vmatpush1.bf16.msra.mxu0 %v646
    %1053 = vmatprep.subr.bf16.mxu0 %v655
    %1054 = vmatpush1.bf16.msra.mxu0 %v654
    %1055 = vmatprep.subr.bf16.mxu0 %v663
    %1056 = vmatpush1.bf16.msra.mxu0 %v662
    %1057 = vmatprep.subr.bf16.mxu0 %v671
    %1058 = vmatpush1.bf16.msra.mxu0 %v670
    %1059 = vmatprep.subr.bf16.mxu0 %v679
    %1060 = vmatpush1.bf16.msra.mxu0 %v678
    %1061 = vmatprep.subr.bf16.mxu0 %v687
    %1062 = vmatpush1.bf16.msra.mxu0 %v686
    %1063 = vmatprep.subr.bf16.mxu0 %v695
    %1064 = vmatpush1.bf16.msra.mxu0 %v694
    %1065 = vmatprep.mubr.bf16.mxu0 %v185
    %1066 = vmatmul.mubr.bf16.gmra.mrb[0].mxu0 %v184
    %v1067 = vpop.f32.mrb[0].mxu0
    %v1068 = vadd.f32 %v904, %v1067
    %v1069 = vpop.f32.mrb[0].mxu0
    %v1070 = vadd.f32 %v906, %v1069
    %v1071 = vpop.f32.mrb[0].mxu0
    %v1072 = vpop.f32.mrb[0].mxu0
    %1073 = vdwg.mxu0
    %1074 = vmatprep.subr.bf16.mxu0 %v577
    %1075 = vmatpush1.bf16.msra.mxu0 %v576
    %1076 = vmatprep.subr.bf16.mxu0 %v585
    %1077 = vmatpush1.bf16.msra.mxu0 %v584
    %1078 = vmatprep.subr.bf16.mxu0 %v593
    %1079 = vmatpush1.bf16.msra.mxu0 %v592
    %1080 = vmatprep.subr.bf16.mxu0 %v601
    %1081 = vmatpush1.bf16.msra.mxu0 %v600
    %1082 = vmatprep.subr.bf16.mxu0 %v609
    %1083 = vmatpush1.bf16.msra.mxu0 %v608
    %1084 = vmatprep.subr.bf16.mxu0 %v617
    %1085 = vmatpush1.bf16.msra.mxu0 %v616
    %1086 = vmatprep.subr.bf16.mxu0 %v625
    %1087 = vmatpush1.bf16.msra.mxu0 %v624
    %1088 = vmatprep.subr.bf16.mxu0 %v633
    %1089 = vmatpush1.bf16.msra.mxu0 %v632
    %1090 = vmatprep.subr.bf16.mxu0 %v641
    %1091 = vmatpush1.bf16.msra.mxu0 %v640
    %1092 = vmatprep.subr.bf16.mxu0 %v649
    %1093 = vmatpush1.bf16.msra.mxu0 %v648
    %1094 = vmatprep.subr.bf16.mxu0 %v657
    %1095 = vmatpush1.bf16.msra.mxu0 %v656
    %1096 = vmatprep.subr.bf16.mxu0 %v665
    %1097 = vmatpush1.bf16.msra.mxu0 %v664
    %1098 = vmatprep.subr.bf16.mxu0 %v673
    %1099 = vmatpush1.bf16.msra.mxu0 %v672
    %1100 = vmatprep.subr.bf16.mxu0 %v681
    %1101 = vmatpush1.bf16.msra.mxu0 %v680
    %1102 = vmatprep.subr.bf16.mxu0 %v689
    %1103 = vmatpush1.bf16.msra.mxu0 %v688
    %1104 = vmatprep.subr.bf16.mxu0 %v697
    %1105 = vmatpush1.bf16.msra.mxu0 %v696
    %1106 = vmatprep.mubr.bf16.mxu0 %v185
    %1107 = vmatmul.mubr.bf16.gmra.mrb[0].mxu0 %v184
    %v1108 = vpop.f32.mrb[0].mxu0
    %v1109 = vadd.f32 %v945, %v1108
    %v1110 = vpop.f32.mrb[0].mxu0
    %v1111 = vadd.f32 %v947, %v1110
    %v1112 = vpop.f32.mrb[0].mxu0
    %v1113 = vpop.f32.mrb[0].mxu0
    %1114 = vdwg.mxu0
    %1115 = vmatprep.subr.bf16.mxu0 %v579
    %1116 = vmatpush1.bf16.msra.mxu0 %v578
    %1117 = vmatprep.subr.bf16.mxu0 %v587
    %1118 = vmatpush1.bf16.msra.mxu0 %v586
    %1119 = vmatprep.subr.bf16.mxu0 %v595
    %1120 = vmatpush1.bf16.msra.mxu0 %v594
    %1121 = vmatprep.subr.bf16.mxu0 %v603
    %1122 = vmatpush1.bf16.msra.mxu0 %v602
    %1123 = vmatprep.subr.bf16.mxu0 %v611
    %1124 = vmatpush1.bf16.msra.mxu0 %v610
    %1125 = vmatprep.subr.bf16.mxu0 %v619
    %1126 = vmatpush1.bf16.msra.mxu0 %v618
    %1127 = vmatprep.subr.bf16.mxu0 %v627
    %1128 = vmatpush1.bf16.msra.mxu0 %v626
    %1129 = vmatprep.subr.bf16.mxu0 %v635
    %1130 = vmatpush1.bf16.msra.mxu0 %v634
    %1131 = vmatprep.subr.bf16.mxu0 %v643
    %1132 = vmatpush1.bf16.msra.mxu0 %v642
    %1133 = vmatprep.subr.bf16.mxu0 %v651
    %1134 = vmatpush1.bf16.msra.mxu0 %v650
    %1135 = vmatprep.subr.bf16.mxu0 %v659
    %1136 = vmatpush1.bf16.msra.mxu0 %v658
    %1137 = vmatprep.subr.bf16.mxu0 %v667
    %1138 = vmatpush1.bf16.msra.mxu0 %v666
    %1139 = vmatprep.subr.bf16.mxu0 %v675
    %1140 = vmatpush1.bf16.msra.mxu0 %v674
    %1141 = vmatprep.subr.bf16.mxu0 %v683
    %1142 = vmatpush1.bf16.msra.mxu0 %v682
    %1143 = vmatprep.subr.bf16.mxu0 %v691
    %1144 = vmatpush1.bf16.msra.mxu0 %v690
    %1145 = vmatprep.subr.bf16.mxu0 %v699
    %1146 = vmatpush1.bf16.msra.mxu0 %v698
    %1147 = vmatprep.mubr.bf16.mxu0 %v185
    %1148 = vmatmul.mubr.bf16.gmra.mrb[0].mxu0 %v184
    %v1149 = vpop.f32.mrb[0].mxu0
    %v1150 = vadd.f32 %v986, %v1149
    %v1151 = vpop.f32.mrb[0].mxu0
    %v1152 = vadd.f32 %v988, %v1151
    %v1153 = vpop.f32.mrb[0].mxu0
    %v1154 = vpop.f32.mrb[0].mxu0
    %1155 = vdwg.mxu0
    %v1156 = vpack.c.bf16 %v54, %v54
    %v1157 = vpack.c.bf16 %v55, %v55
    %1158 = vmatprep.subr.bf16.mxu0 %v573
    %1159 = vmatpush1.bf16.msra.mxu0 %v572
    %1160 = vmatprep.subr.bf16.mxu0 %v581
    %1161 = vmatpush1.bf16.msra.mxu0 %v580
    %1162 = vmatprep.subr.bf16.mxu0 %v589
    %1163 = vmatpush1.bf16.msra.mxu0 %v588
    %1164 = vmatprep.subr.bf16.mxu0 %v597
    %1165 = vmatpush1.bf16.msra.mxu0 %v596
    %1166 = vmatprep.subr.bf16.mxu0 %v605
    %1167 = vmatpush1.bf16.msra.mxu0 %v604
    %1168 = vmatprep.subr.bf16.mxu0 %v613
    %1169 = vmatpush1.bf16.msra.mxu0 %v612
    %1170 = vmatprep.subr.bf16.mxu0 %v621
    %1171 = vmatpush1.bf16.msra.mxu0 %v620
    %1172 = vmatprep.subr.bf16.mxu0 %v629
    %1173 = vmatpush1.bf16.msra.mxu0 %v628
    %1174 = vmatprep.subr.bf16.mxu0 %v637
    %1175 = vmatpush1.bf16.msra.mxu0 %v636
    %1176 = vmatprep.subr.bf16.mxu0 %v645
    %1177 = vmatpush1.bf16.msra.mxu0 %v644
    %1178 = vmatprep.subr.bf16.mxu0 %v653
    %1179 = vmatpush1.bf16.msra.mxu0 %v652
    %1180 = vmatprep.subr.bf16.mxu0 %v661
    %1181 = vmatpush1.bf16.msra.mxu0 %v660
    %1182 = vmatprep.subr.bf16.mxu0 %v669
    %1183 = vmatpush1.bf16.msra.mxu0 %v668
    %1184 = vmatprep.subr.bf16.mxu0 %v677
    %1185 = vmatpush1.bf16.msra.mxu0 %v676
    %1186 = vmatprep.subr.bf16.mxu0 %v685
    %1187 = vmatpush1.bf16.msra.mxu0 %v684
    %1188 = vmatprep.subr.bf16.mxu0 %v693
    %1189 = vmatpush1.bf16.msra.mxu0 %v692
    %1190 = vmatprep.mubr.bf16.mxu0 %v1157
    %1191 = vmatmul.mubr.bf16.gmra.mrb[0].mxu0 %v1156
    %v1192 = vpop.f32.mrb[0].mxu0
    %v1193 = vadd.f32 0.0, %v1192
    %v1194 = vpop.f32.mrb[0].mxu0
    %v1195 = vadd.f32 0.0, %v1194
    %v1196 = vpop.f32.mrb[0].mxu0
    %v1197 = vpop.f32.mrb[0].mxu0
    %1198 = vdwg.mxu0
    %1199 = vmatprep.subr.bf16.mxu0 %v575
    %1200 = vmatpush1.bf16.msra.mxu0 %v574
    %1201 = vmatprep.subr.bf16.mxu0 %v583
    %1202 = vmatpush1.bf16.msra.mxu0 %v582
    %1203 = vmatprep.subr.bf16.mxu0 %v591
    %1204 = vmatpush1.bf16.msra.mxu0 %v590
    %1205 = vmatprep.subr.bf16.mxu0 %v599
    %1206 = vmatpush1.bf16.msra.mxu0 %v598
    %1207 = vmatprep.subr.bf16.mxu0 %v607
    %1208 = vmatpush1.bf16.msra.mxu0 %v606
    %1209 = vmatprep.subr.bf16.mxu0 %v615
    %1210 = vmatpush1.bf16.msra.mxu0 %v614
    %1211 = vmatprep.subr.bf16.mxu0 %v623
    %1212 = vmatpush1.bf16.msra.mxu0 %v622
    %1213 = vmatprep.subr.bf16.mxu0 %v631
    %1214 = vmatpush1.bf16.msra.mxu0 %v630
    %1215 = vmatprep.subr.bf16.mxu0 %v639
    %1216 = vmatpush1.bf16.msra.mxu0 %v638
    %1217 = vmatprep.subr.bf16.mxu0 %v647
    %1218 = vmatpush1.bf16.msra.mxu0 %v646
    %1219 = vmatprep.subr.bf16.mxu0 %v655
    %1220 = vmatpush1.bf16.msra.mxu0 %v654
    %1221 = vmatprep.subr.bf16.mxu0 %v663
    %1222 = vmatpush1.bf16.msra.mxu0 %v662
    %1223 = vmatprep.subr.bf16.mxu0 %v671
    %1224 = vmatpush1.bf16.msra.mxu0 %v670
    %1225 = vmatprep.subr.bf16.mxu0 %v679
    %1226 = vmatpush1.bf16.msra.mxu0 %v678
    %1227 = vmatprep.subr.bf16.mxu0 %v687
    %1228 = vmatpush1.bf16.msra.mxu0 %v686
    %1229 = vmatprep.subr.bf16.mxu0 %v695
    %1230 = vmatpush1.bf16.msra.mxu0 %v694
    %1231 = vmatprep.mubr.bf16.mxu0 %v1157
    %1232 = vmatmul.mubr.bf16.gmra.mrb[0].mxu0 %v1156
    %v1233 = vpop.f32.mrb[0].mxu0
    %v1234 = vadd.f32 0.0, %v1233
    %v1235 = vpop.f32.mrb[0].mxu0
    %v1236 = vadd.f32 0.0, %v1235
    %v1237 = vpop.f32.mrb[0].mxu0
    %v1238 = vpop.f32.mrb[0].mxu0
    %1239 = vdwg.mxu0
    %1240 = vmatprep.subr.bf16.mxu0 %v577
    %1241 = vmatpush1.bf16.msra.mxu0 %v576
    %1242 = vmatprep.subr.bf16.mxu0 %v585
    %1243 = vmatpush1.bf16.msra.mxu0 %v584
    %1244 = vmatprep.subr.bf16.mxu0 %v593
    %1245 = vmatpush1.bf16.msra.mxu0 %v592
    %1246 = vmatprep.subr.bf16.mxu0 %v601
    %1247 = vmatpush1.bf16.msra.mxu0 %v600
    %1248 = vmatprep.subr.bf16.mxu0 %v609
    %1249 = vmatpush1.bf16.msra.mxu0 %v608
    %1250 = vmatprep.subr.bf16.mxu0 %v617
    %1251 = vmatpush1.bf16.msra.mxu0 %v616
    %1252 = vmatprep.subr.bf16.mxu0 %v625
    %1253 = vmatpush1.bf16.msra.mxu0 %v624
    %1254 = vmatprep.subr.bf16.mxu0 %v633
    %1255 = vmatpush1.bf16.msra.mxu0 %v632
    %1256 = vmatprep.subr.bf16.mxu0 %v641
    %1257 = vmatpush1.bf16.msra.mxu0 %v640
    %1258 = vmatprep.subr.bf16.mxu0 %v649
    %1259 = vmatpush1.bf16.msra.mxu0 %v648
    %1260 = vmatprep.subr.bf16.mxu0 %v657
    %1261 = vmatpush1.bf16.msra.mxu0 %v656
    %1262 = vmatprep.subr.bf16.mxu0 %v665
    %1263 = vmatpush1.bf16.msra.mxu0 %v664
    %1264 = vmatprep.subr.bf16.mxu0 %v673
    %1265 = vmatpush1.bf16.msra.mxu0 %v672
    %1266 = vmatprep.subr.bf16.mxu0 %v681
    %1267 = vmatpush1.bf16.msra.mxu0 %v680
    %1268 = vmatprep.subr.bf16.mxu0 %v689
    %1269 = vmatpush1.bf16.msra.mxu0 %v688
    %1270 = vmatprep.subr.bf16.mxu0 %v697
    %1271 = vmatpush1.bf16.msra.mxu0 %v696
    %1272 = vmatprep.mubr.bf16.mxu0 %v1157
    %1273 = vmatmul.mubr.bf16.gmra.mrb[0].mxu0 %v1156
    %v1274 = vpop.f32.mrb[0].mxu0
    %v1275 = vadd.f32 0.0, %v1274
    %v1276 = vpop.f32.mrb[0].mxu0
    %v1277 = vadd.f32 0.0, %v1276
    %v1278 = vpop.f32.mrb[0].mxu0
    %v1279 = vpop.f32.mrb[0].mxu0
    %1280 = vdwg.mxu0
    %1281 = vmatprep.subr.bf16.mxu0 %v579
    %1282 = vmatpush1.bf16.msra.mxu0 %v578
    %1283 = vmatprep.subr.bf16.mxu0 %v587
    %1284 = vmatpush1.bf16.msra.mxu0 %v586
    %1285 = vmatprep.subr.bf16.mxu0 %v595
    %1286 = vmatpush1.bf16.msra.mxu0 %v594
    %1287 = vmatprep.subr.bf16.mxu0 %v603
    %1288 = vmatpush1.bf16.msra.mxu0 %v602
    %1289 = vmatprep.subr.bf16.mxu0 %v611
    %1290 = vmatpush1.bf16.msra.mxu0 %v610
    %1291 = vmatprep.subr.bf16.mxu0 %v619
    %1292 = vmatpush1.bf16.msra.mxu0 %v618
    %1293 = vmatprep.subr.bf16.mxu0 %v627
    %1294 = vmatpush1.bf16.msra.mxu0 %v626
    %1295 = vmatprep.subr.bf16.mxu0 %v635
    %1296 = vmatpush1.bf16.msra.mxu0 %v634
    %1297 = vmatprep.subr.bf16.mxu0 %v643
    %1298 = vmatpush1.bf16.msra.mxu0 %v642
    %1299 = vmatprep.subr.bf16.mxu0 %v651
    %1300 = vmatpush1.bf16.msra.mxu0 %v650
    %1301 = vmatprep.subr.bf16.mxu0 %v659
    %1302 = vmatpush1.bf16.msra.mxu0 %v658
    %1303 = vmatprep.subr.bf16.mxu0 %v667
    %1304 = vmatpush1.bf16.msra.mxu0 %v666
    %1305 = vmatprep.subr.bf16.mxu0 %v675
    %1306 = vmatpush1.bf16.msra.mxu0 %v674
    %1307 = vmatprep.subr.bf16.mxu0 %v683
    %1308 = vmatpush1.bf16.msra.mxu0 %v682
    %1309 = vmatprep.subr.bf16.mxu0 %v691
    %1310 = vmatpush1.bf16.msra.mxu0 %v690
    %1311 = vmatprep.subr.bf16.mxu0 %v699
    %1312 = vmatpush1.bf16.msra.mxu0 %v698
    %1313 = vmatprep.mubr.bf16.mxu0 %v1157
    %1314 = vmatmul.mubr.bf16.gmra.mrb[0].mxu0 %v1156
    %v1315 = vpop.f32.mrb[0].mxu0
    %v1316 = vadd.f32 0.0, %v1315
    %v1317 = vpop.f32.mrb[0].mxu0
    %v1318 = vadd.f32 0.0, %v1317
    %v1319 = vpop.f32.mrb[0].mxu0
    %v1320 = vpop.f32.mrb[0].mxu0
    %1321 = vdwg.mxu0
    %v1322 = vadd.f32 %v1027, %v1193
    %v1323 = vadd.f32 %v1029, %v1195
    %v1324 = vadd.f32 %v1068, %v1234
    %v1325 = vadd.f32 %v1070, %v1236
    %v1326 = vadd.f32 %v1109, %v1275
    %v1327 = vadd.f32 %v1111, %v1277
    %v1328 = vadd.f32 %v1150, %v1316
    %v1329 = vadd.f32 %v1152, %v1318
    %1330 = vst [vmem:[#allocation7] sm:$0xff] %v1322
    %1331 = vst [vmem:[#allocation7 + $0x8] sm:$0xff] %v1323
    %1332 = vst [vmem:[#allocation7 + $0x10] sm:$0xff] %v1324
    %1333 = vst [vmem:[#allocation7 + $0x18] sm:$0xff] %v1325
    %1334 = vst [vmem:[#allocation7 + $0x20] sm:$0xff] %v1326
    %1335 = vst [vmem:[#allocation7 + $0x28] sm:$0xff] %v1327
    %1336 = vst [vmem:[#allocation7 + $0x30] sm:$0xff] %v1328
    %1337 = vst [vmem:[#allocation7 + $0x38] sm:$0xff] %v1329
    // Predicated region
    $region18: #{tpu_custom_call.1} parent=1 // pred_check
      _
    $region19: #{tpu_custom_call.1} parent=1 // pred_check_branch
      %1339 = sbr.rel (0) target = $region21
    $region20: #{tpu_custom_call.1} parent=1 // pred_region
      %s1341 = ssub.s32 1024, 1024
      %1342 = vsyncadd [#allocation4], %s1341
      %s1344 = sshll.u32 [#allocation7], 4
      %s1345 = int_to_ptr.vmem [resolvable:$true] %s1344
      %1347 = dma.vmem_to_hbm [thread:$0]  %s1345, 1024, %s2, [#allocation4]
    $region21: #{tpu_custom_call.1} parent=1 // pred_fallthru
      _
    // Predicated region
    $region22: #{tpu_custom_call.1} parent=1 // pred_check
      _
    $region23: #{tpu_custom_call.1} parent=1 // pred_check_branch
      %1349 = sbr.rel (0) target = $region25
    $region24: #{tpu_custom_call.1} parent=1 // pred_region
      %1350 = dma.done [#allocation4], 1024
    $region25: #{tpu_custom_call.1} parent=1 // pred_fallthru
      _
    %1351 = vsyncpa [#allocation3], 1
    %1352 = vsyncpa [#allocation6], 1
    %1353 = vsyncpa [#allocation4], 1

</llo_original>
